<compile_context>
chip_gen: v7x
topology: tpu7x:2x2x1
jax: 0.10.0
libtpu: 0.0.40
codegen_flags: <defaults>
</compile_context>

<pallas_src>
import functools

import jax
import jax.numpy as jnp
from jax import lax
from jax.experimental import pallas as pl
from jax.experimental.pallas import tpu as pltpu


def _round_up(x, m):
    return ((x + m - 1) // m) * m


# ----------------------------------------------------------------------------
# Pallas kernel: pair-wise IoU cost matrix, one grid step per batch element
# ----------------------------------------------------------------------------
def make_cost_kernel(*, N, C, HW, M, RPAD):
    assert C >= 2, "IoU cost excludes background class 0; need C >= 2"
    Cm1 = C - 1
    Kfg = Cm1 * HW
    IND = C                      # sentinel label -> per-class all-ones indicator row
    inv = 1.0 / float(Cm1)

    def kernel(sample_ref, gt_ref, gcnt_ref, cost_ref, rhs_ref):
        # sample_ref: (N, C*HW)        bf16  -- native (B,N,C,H,W) layout, flattened view
        # gt_ref:     (RPAD, HW)       int32 -- rows 0..M-1 labels, row M == IND, rest -1
        # gcnt_ref:   (Cm1, M)         f32   -- per-(class, gt) pixel counts (XLA-side)
        # cost_ref:   (N, M)           f32
        # rhs_ref:    (Cm1*RPAD, Kfg)  bf16 scratch -- block-diagonal one-hot RHS
        rhs_ref[...] = jnp.zeros_like(rhs_ref)       # off-diagonal blocks stay zero
        gt = gt_ref[...]
        # One compare per class, written only into the 16-row / 128-lane aligned diagonal
        # block.  Row M of each block (label == IND) becomes the all-ones indicator row
        # that makes the matmul also emit the per-class sample sums.
        for cb in range(Cm1):                        # static unroll; C is small here
            mask = ((gt == (cb + 1)) | (gt == IND)).astype(jnp.bfloat16)
            rhs_ref[pl.ds(cb * RPAD, RPAD), pl.ds(cb * HW, HW)] = mask

        # Foreground classes 1..C-1 as a free lane slice of the sample block.
        s_fg = sample_ref[:, pl.ds(HW, Kfg)]         # (N, Kfg) bf16
        # Single MXU call: intersections for all (class, gt) pairs + per-class sums.
        r = lax.dot_general(
            s_fg, rhs_ref[...],
            dimension_numbers=(((1,), (1,)), ((), ())),
            preferred_element_type=jnp.float32)      # (N, Cm1*RPAD) f32

        gcnt = gcnt_ref[...]                         # (Cm1, M)
        acc = jnp.zeros((N, M), jnp.float32)
        for cb in range(Cm1):
            base = cb * RPAD
            inter = r[:, base:base + M]              # (N, M)
            s_sum = r[:, base + M:base + M + 1]      # (N, 1)  from the indicator row
            g_sum = gcnt[cb:cb + 1, :]               # (1, M)
            union = s_sum + g_sum - inter
            acc = acc + (inter + 1.0) / (union + 1.0)
        # (N, M=3) masked lane store accepted: padding M 42x to reach 128 lanes would cost
        # far more than it saves at these sizes.
        cost_ref[...] = 1.0 - acc * inv

    return kernel


def pallas_cost_matrix(sample_flat, gt_pad, gcnt, *, N, C, HW, M, RPAD):
    B = sample_flat.shape[0]
    CHW = sample_flat.shape[2]
    Cm1 = C - 1
    Kfg = Cm1 * HW
    kernel = make_cost_kernel(N=N, C=C, HW=HW, M=M, RPAD=RPAD)

    # VMEM budget (review fix): padded tile sizes, exactly 2x per double-buffered in/out
    # block, 1x scratch, small slack for in-kernel temporaries.
    samp_b = _round_up(N, 16) * _round_up(CHW, 128) * 2          # bf16 (16,128) tiles
    gt_b = _round_up(RPAD, 8) * _round_up(HW, 128) * 4           # int32 (8,128) tiles
    gcnt_b = _round_up(Cm1, 8) * _round_up(M, 128) * 4
    out_b = _round_up(N, 8) * _round_up(M, 128) * 4
    rhs_b = _round_up(Cm1 * RPAD, 16) * _round_up(Kfg, 128) * 2
    need = 2 * (samp_b + gt_b + gcnt_b + out_b) + rhs_b + (2 << 20)
    # TODO(synk): if `need` approaches the 56 MiB cap (v7x: 64 MiB physical VMEM), split
    # HW/classes onto an extra "arbitrary" grid axis with an (N, M) accumulator.
    vmem_limit = int(min(max(need, 32 << 20), 56 << 20))

    return pl.pallas_call(
        kernel,
        out_shape=jax.ShapeDtypeStruct((B, N, M), jnp.float32),
        grid_spec=pltpu.PrefetchScalarGridSpec(
            num_scalar_prefetch=0,
            grid=(B,),
            in_specs=[
                pl.BlockSpec((None, N, CHW), lambda b: (b, 0, 0)),
                pl.BlockSpec((None, RPAD, HW), lambda b: (b, 0, 0)),
                pl.BlockSpec((None, Cm1, M), lambda b: (b, 0, 0)),
            ],
            out_specs=pl.BlockSpec((None, N, M), lambda b: (b, 0, 0)),
            scratch_shapes=[pltpu.VMEM((Cm1 * RPAD, Kfg), jnp.bfloat16)],
        ),
        compiler_params=pltpu.CompilerParams(
            dimension_semantics=("parallel",),       # B across TCs on v7x megacore
            vmem_limit_bytes=vmem_limit),
    )(sample_flat, gt_pad, gcnt)


# ----------------------------------------------------------------------------
# Glue: greedy coupling matrix (no-grad in the reference), scatter-free JAX.
# ----------------------------------------------------------------------------
def get_coupling_matrix(cost, prob_gt, gamma):
    # Reference gamma != 1 branch: columns processed in ascending min-cost order; within a
    # column, rows are filled in ascending cost order with per-row capacity gamma and a
    # uniform 1/M column budget (the reference's `uniform`), then rescaled by prob_gt*M.
    # The per-column fill is expressed as rank-mask water-filling (an (N,N) masked sum),
    # so the scan body has no gathers/sorts/scatters; columns are reordered once at the end.
    # TODO(synk): the gamma == 1 one-hot fast path is not special-cased (gamma0=0.5 default
    # never takes it).
    B, N, M = cost.shape
    u = 1.0 / float(M)
    cost = cost.astype(jnp.float32)
    order = jnp.argsort(jnp.min(cost, axis=1), axis=-1)           # (B, M) column order
    idx = jnp.arange(N)

    def per_batch(cost_b, order_b):
        def step(row_sum, i):
            c_i = lax.dynamic_slice_in_dim(cost_b, i, 1, axis=1)[:, 0]      # (N,)
            cap = jnp.maximum(gamma - row_sum, 0.0)                         # row capacity
            before = (c_i[None, :] < c_i[:, None]) | (
                (c_i[None, :] == c_i[:, None]) & (idx[None, :] < idx[:, None]))
            cum_before = jnp.sum(jnp.where(before, cap[None, :], 0.0), axis=1)
            alloc = jnp.minimum(cap, jnp.maximum(u - cum_before, 0.0))      # water-filling
            return row_sum + alloc, alloc

        _, alloc_seq = lax.scan(step, jnp.zeros((N,), jnp.float32), order_b)  # (M, N)
        return alloc_seq[jnp.argsort(order_b)].T                              # (N, M)

    P = jax.vmap(per_batch)(cost, order)
    return P * (prob_gt[:, None, :].astype(jnp.float32) * float(M))


# ----------------------------------------------------------------------------
# OT_loss forward
# ----------------------------------------------------------------------------
def ot_loss_forward(gt_arr, sample_arr, prob, prob_gt, sample_shape,
                    beta=1.0, gamma=0.5, G=1.0):
    B, N, C, H, W = sample_arr.shape
    M = gt_arr.shape[1]
    HW = H * W
    assert C >= 2, "IoU cost excludes background class 0; need C >= 2"
    del sample_shape   # only used by the G < 1 soft-gradient branch (not implemented)
    RPAD = _round_up(M + 1, 16)     # bf16 sublane tile -> aligned per-class RHS blocks

    # Free row-major view of the big sample tensor; bf16 halves the kernel's HBM read
    # (in a real pipeline the cast fuses into the producer network).
    sample_flat = sample_arr.reshape(B, N, C * HW).astype(jnp.bfloat16)

    # GT stays lane-major (no transpose). Row M is the IND sentinel (== C) that turns into
    # the per-class all-ones indicator row in-kernel; padding rows are -1 (match nothing).
    gt_hw = gt_arr.reshape(B, M, HW).astype(jnp.int32)
    gt_pad = jnp.concatenate(
        [gt_hw,
         jnp.full((B, 1, HW), C, jnp.int32),
         jnp.full((B, RPAD - M - 1, HW), -1, jnp.int32)], axis=1)           # (B, RPAD, HW)

    # Per-(class, gt) pixel counts: depends only on the tiny label tensor -> compute in XLA
    # and feed lane-oriented (C-1, M) to the kernel.
    classes = jnp.arange(1, C, dtype=jnp.int32)
    gcnt = jnp.sum(gt_hw[:, None, :, :] == classes[None, :, None, None],
                   axis=-1).astype(jnp.float32)                             # (B, C-1, M)

    cost = pallas_cost_matrix(sample_flat, gt_pad, gcnt,
                              N=N, C=C, HW=HW, M=M, RPAD=RPAD)              # (B, N, M)

    P = lax.stop_gradient(get_coupling_matrix(cost, prob_gt, gamma))

    # seg / KL reductions: tiny, left to XLA fusion (review: a second pallas_call here was
    # pure launch overhead plus a masked (1,1) store).
    seg_loss = jnp.mean(jnp.sum(P * cost, axis=(1, 2)))
    target = jnp.sum(P, axis=-1)                                            # (B, N)
    log_input = jnp.log(prob.astype(jnp.float32) + 1e-8)
    safe_t = jnp.where(target > 0, target, 1.0)
    # F.kl_div(log(prob+eps), target), reduction='mean': target*(log(target)-input),
    # zero where target <= 0.
    kl_loss = jnp.mean(jnp.where(target > 0,
                                 target * (jnp.log(safe_t) - log_input), 0.0))
    # TODO(synk): get_soft_gradients (G < 1) grouping branch not implemented -- default
    # G0 = 1.0 never takes it.
    loss = seg_loss + beta * kl_loss
    return loss, seg_loss, kl_loss


if __name__ == "__main__":
    key = jax.random.PRNGKey(0)
    B, C, H, W = 2, 4, 16, 16
    K, S = 2, 4
    N = K * S          # number of predicted samples
    M = 3              # number of ground-truth annotations

    k1, k2, k3, k4 = jax.random.split(key, 4)
    sample_arr = jax.nn.softmax(
        jax.random.normal(k1, (B, N, C, H, W), jnp.float32), axis=2)
    gt_arr = jax.random.randint(k2, (B, M, H, W), 0, C)
    prob = jax.nn.softmax(jax.random.normal(k3, (B, N), jnp.float32), axis=-1)
    prob_gt = jax.nn.softmax(jax.random.normal(k4, (B, M), jnp.float32), axis=-1)

    fwd = jax.jit(functools.partial(ot_loss_forward, sample_shape=(K, S)))
    loss, seg_loss, kl_loss = fwd(gt_arr, sample_arr, prob, prob_gt)
    jax.block_until_ready((loss, seg_loss, kl_loss))
    print("KERNEL_OK")
</pallas_src>

<mosaic_0001>
module attributes {stable_mosaic.version = 11 : i64} {
  func.func @kernel(%arg0: i32, %arg1: memref<1x8x1024xbf16, #tpu.memory_space<vmem>>, %arg2: memref<1x16x256xi32, #tpu.memory_space<vmem>>, %arg3: memref<1x3x3xf32, #tpu.memory_space<vmem>>, %arg4: memref<1x8x3xf32, #tpu.memory_space<vmem>>, %arg5: memref<48x768xbf16, #tpu.memory_space<vmem>>) attributes {dimension_semantics = [#tpu.dimension_semantics<parallel>], iteration_bounds = array<i64: 2>, scalar_prefetch = 0 : i64, scratch_operands = 1 : i64, tpu.core_type = #tpu.core_type<tc>, window_params = [{transform_indices = @transform_0, window_bounds = array<i64: 1, 8, 1024>}, {transform_indices = @transform_1, window_bounds = array<i64: 1, 16, 256>}, {transform_indices = @transform_2, window_bounds = array<i64: 1, 3, 3>}, {transform_indices = @transform_3, window_bounds = array<i64: 1, 8, 3>}]} {
    %cst = arith.constant 0.000000e+00 : bf16
    %0 = vector.broadcast %cst : bf16 to vector<48x768xbf16>
    %c0 = arith.constant 0 : index
    %c0_0 = arith.constant 0 : index
    %1 = vector.load %arg5[%c0, %c0_0] : memref<48x768xbf16, #tpu.memory_space<vmem>>, vector<48x768xbf16>
    tpu.vector_store %arg5[%c0, %c0_0], %0 {strides = array<i32>} : memref<48x768xbf16, #tpu.memory_space<vmem>>, vector<48x768xbf16>,
    %c0_1 = arith.constant 0 : index
    %c0_2 = arith.constant 0 : index
    %c0_3 = arith.constant 0 : index
    %2 = vector.load %arg2[%c0_1, %c0_2, %c0_3] : memref<1x16x256xi32, #tpu.memory_space<vmem>>, vector<1x16x256xi32>
    %3 = vector.shape_cast %2 : vector<1x16x256xi32> to vector<16x256xi32>
    %c1_i32 = arith.constant 1 : i32
    %4 = vector.broadcast %c1_i32 : i32 to vector<16x256xi32>
    %5 = arith.cmpi eq, %3, %4 : vector<16x256xi32>
    %c4_i32 = arith.constant 4 : i32
    %6 = vector.broadcast %c4_i32 : i32 to vector<16x256xi32>
    %7 = arith.cmpi eq, %3, %6 : vector<16x256xi32>
    %8 = arith.ori %5, %7 : vector<16x256xi1>
    %9 = arith.extui %8 : vector<16x256xi1> to vector<16x256xi32>
    %10 = arith.sitofp %9 : vector<16x256xi32> to vector<16x256xf32>
    %11 = arith.truncf %10 : vector<16x256xf32> to vector<16x256xbf16>
    %c0_4 = arith.constant 0 : index
    %c0_5 = arith.constant 0 : index
    %12 = vector.load %arg5[%c0_4, %c0_5] : memref<48x768xbf16, #tpu.memory_space<vmem>>, vector<16x256xbf16>
    tpu.vector_store %arg5[%c0_4, %c0_5], %11 {strides = array<i32>} : memref<48x768xbf16, #tpu.memory_space<vmem>>, vector<16x256xbf16>,
    %c2_i32 = arith.constant 2 : i32
    %13 = vector.broadcast %c2_i32 : i32 to vector<16x256xi32>
    %14 = arith.cmpi eq, %3, %13 : vector<16x256xi32>
    %c4_i32_6 = arith.constant 4 : i32
    %15 = vector.broadcast %c4_i32_6 : i32 to vector<16x256xi32>
    %16 = arith.cmpi eq, %3, %15 : vector<16x256xi32>
    %17 = arith.ori %14, %16 : vector<16x256xi1>
    %18 = arith.extui %17 : vector<16x256xi1> to vector<16x256xi32>
    %19 = arith.sitofp %18 : vector<16x256xi32> to vector<16x256xf32>
    %20 = arith.truncf %19 : vector<16x256xf32> to vector<16x256xbf16>
    %c16 = arith.constant 16 : index
    %c256 = arith.constant 256 : index
    %21 = vector.load %arg5[%c16, %c256] : memref<48x768xbf16, #tpu.memory_space<vmem>>, vector<16x256xbf16>
    tpu.vector_store %arg5[%c16, %c256], %20 {strides = array<i32>} : memref<48x768xbf16, #tpu.memory_space<vmem>>, vector<16x256xbf16>,
    %c3_i32 = arith.constant 3 : i32
    %22 = vector.broadcast %c3_i32 : i32 to vector<16x256xi32>
    %23 = arith.cmpi eq, %3, %22 : vector<16x256xi32>
    %c4_i32_7 = arith.constant 4 : i32
    %24 = vector.broadcast %c4_i32_7 : i32 to vector<16x256xi32>
    %25 = arith.cmpi eq, %3, %24 : vector<16x256xi32>
    %26 = arith.ori %23, %25 : vector<16x256xi1>
    %27 = arith.extui %26 : vector<16x256xi1> to vector<16x256xi32>
    %28 = arith.sitofp %27 : vector<16x256xi32> to vector<16x256xf32>
    %29 = arith.truncf %28 : vector<16x256xf32> to vector<16x256xbf16>
    %c32 = arith.constant 32 : index
    %c512 = arith.constant 512 : index
    %30 = vector.load %arg5[%c32, %c512] : memref<48x768xbf16, #tpu.memory_space<vmem>>, vector<16x256xbf16>
    tpu.vector_store %arg5[%c32, %c512], %29 {strides = array<i32>} : memref<48x768xbf16, #tpu.memory_space<vmem>>, vector<16x256xbf16>,
    %c0_8 = arith.constant 0 : index
    %c0_9 = arith.constant 0 : index
    %c256_10 = arith.constant 256 : index
    %31 = vector.load %arg1[%c0_8, %c0_9, %c256_10] : memref<1x8x1024xbf16, #tpu.memory_space<vmem>>, vector<1x8x768xbf16>
    %32 = vector.shape_cast %31 : vector<1x8x768xbf16> to vector<8x768xbf16>
    %c0_11 = arith.constant 0 : index
    %c0_12 = arith.constant 0 : index
    %33 = vector.load %arg5[%c0_11, %c0_12] : memref<48x768xbf16, #tpu.memory_space<vmem>>, vector<48x768xbf16>
    %cst_13 = arith.constant dense<0.000000e+00> : vector<8x48xf32>
    %34 = tpu.matmul %32, %33, %cst_13 {dimension_numbers = #tpu.dot_dimension_numbers<[1], [1], [0], [0], [0, 0, 1, 0], [], []>} : vector<8x768xbf16>, vector<48x768xbf16>, vector<8x48xf32> -> vector<8x48xf32>
    %c0_14 = arith.constant 0 : index
    %c0_15 = arith.constant 0 : index
    %c0_16 = arith.constant 0 : index
    %35 = vector.load %arg3[%c0_14, %c0_15, %c0_16] : memref<1x3x3xf32, #tpu.memory_space<vmem>>, vector<1x3x3xf32>
    %36 = vector.shape_cast %35 : vector<1x3x3xf32> to vector<3x3xf32>
    %cst_17 = arith.constant 0.000000e+00 : f32
    %37 = vector.broadcast %cst_17 : f32 to vector<8x3xf32>
    %38 = vector.extract_strided_slice %34 {offsets = [0, 0], sizes = [8, 3], strides = [1, 1]} : vector<8x48xf32> to vector<8x3xf32>
    %39 = vector.extract_strided_slice %34 {offsets = [0, 3], sizes = [8, 1], strides = [1, 1]} : vector<8x48xf32> to vector<8x1xf32>
    %40 = vector.extract_strided_slice %36 {offsets = [0, 0], sizes = [1, 3], strides = [1, 1]} : vector<3x3xf32> to vector<1x3xf32>
    %41 = vector.broadcast %39 : vector<8x1xf32> to vector<8x3xf32>
    %42 = vector.broadcast %40 : vector<1x3xf32> to vector<8x3xf32>
    %43 = arith.addf %41, %42 : vector<8x3xf32>
    %44 = arith.subf %43, %38 : vector<8x3xf32>
    %cst_18 = arith.constant 1.000000e+00 : f32
    %45 = vector.broadcast %cst_18 : f32 to vector<8x3xf32>
    %46 = arith.addf %38, %45 : vector<8x3xf32>
    %cst_19 = arith.constant 1.000000e+00 : f32
    %47 = vector.broadcast %cst_19 : f32 to vector<8x3xf32>
    %48 = arith.addf %44, %47 : vector<8x3xf32>
    %49 = arith.divf %46, %48 : vector<8x3xf32>
    %50 = arith.addf %37, %49 : vector<8x3xf32>
    %51 = vector.extract_strided_slice %34 {offsets = [0, 16], sizes = [8, 3], strides = [1, 1]} : vector<8x48xf32> to vector<8x3xf32>
    %52 = vector.extract_strided_slice %34 {offsets = [0, 19], sizes = [8, 1], strides = [1, 1]} : vector<8x48xf32> to vector<8x1xf32>
    %53 = vector.extract_strided_slice %36 {offsets = [1, 0], sizes = [1, 3], strides = [1, 1]} : vector<3x3xf32> to vector<1x3xf32>
    %54 = vector.broadcast %52 : vector<8x1xf32> to vector<8x3xf32>
    %55 = vector.broadcast %53 : vector<1x3xf32> to vector<8x3xf32>
    %56 = arith.addf %54, %55 : vector<8x3xf32>
    %57 = arith.subf %56, %51 : vector<8x3xf32>
    %cst_20 = arith.constant 1.000000e+00 : f32
    %58 = vector.broadcast %cst_20 : f32 to vector<8x3xf32>
    %59 = arith.addf %51, %58 : vector<8x3xf32>
    %cst_21 = arith.constant 1.000000e+00 : f32
    %60 = vector.broadcast %cst_21 : f32 to vector<8x3xf32>
    %61 = arith.addf %57, %60 : vector<8x3xf32>
    %62 = arith.divf %59, %61 : vector<8x3xf32>
    %63 = arith.addf %50, %62 : vector<8x3xf32>
    %64 = vector.extract_strided_slice %34 {offsets = [0, 32], sizes = [8, 3], strides = [1, 1]} : vector<8x48xf32> to vector<8x3xf32>
    %65 = vector.extract_strided_slice %34 {offsets = [0, 35], sizes = [8, 1], strides = [1, 1]} : vector<8x48xf32> to vector<8x1xf32>
    %66 = vector.extract_strided_slice %36 {offsets = [2, 0], sizes = [1, 3], strides = [1, 1]} : vector<3x3xf32> to vector<1x3xf32>
    %67 = vector.broadcast %65 : vector<8x1xf32> to vector<8x3xf32>
    %68 = vector.broadcast %66 : vector<1x3xf32> to vector<8x3xf32>
    %69 = arith.addf %67, %68 : vector<8x3xf32>
    %70 = arith.subf %69, %64 : vector<8x3xf32>
    %cst_22 = arith.constant 1.000000e+00 : f32
    %71 = vector.broadcast %cst_22 : f32 to vector<8x3xf32>
    %72 = arith.addf %64, %71 : vector<8x3xf32>
    %cst_23 = arith.constant 1.000000e+00 : f32
    %73 = vector.broadcast %cst_23 : f32 to vector<8x3xf32>
    %74 = arith.addf %70, %73 : vector<8x3xf32>
    %75 = arith.divf %72, %74 : vector<8x3xf32>
    %76 = arith.addf %63, %75 : vector<8x3xf32>
    %cst_24 = arith.constant 0.333333343 : f32
    %77 = vector.broadcast %cst_24 : f32 to vector<8x3xf32>
    %78 = arith.mulf %76, %77 : vector<8x3xf32>
    %cst_25 = arith.constant 1.000000e+00 : f32
    %79 = vector.broadcast %cst_25 : f32 to vector<8x3xf32>
    %80 = arith.subf %79, %78 : vector<8x3xf32>
    %c0_26 = arith.constant 0 : index
    %c0_27 = arith.constant 0 : index
    %c0_28 = arith.constant 0 : index
    %81 = vector.load %arg4[%c0_26, %c0_27, %c0_28] : memref<1x8x3xf32, #tpu.memory_space<vmem>>, vector<1x8x3xf32>
    %82 = vector.shape_cast %81 : vector<1x8x3xf32> to vector<8x3xf32>
    %83 = vector.shape_cast %80 : vector<8x3xf32> to vector<1x8x3xf32>
    tpu.vector_store %arg4[%c0_26, %c0_27, %c0_28], %83 {strides = array<i32>} : memref<1x8x3xf32, #tpu.memory_space<vmem>>, vector<1x8x3xf32>,
    return
  }
  func.func @transform_0(%arg0: i32) -> (i32, i32, i32) {
    %c0_i32 = arith.constant 0 : i32
    %c0_i32_0 = arith.constant 0 : i32
    %c0_i32_1 = arith.constant 0 : i32
    return %arg0, %c0_i32, %c0_i32_0 : i32, i32, i32
  }
  func.func @transform_1(%arg0: i32) -> (i32, i32, i32) {
    %c0_i32 = arith.constant 0 : i32
    %c0_i32_0 = arith.constant 0 : i32
    %c0_i32_1 = arith.constant 0 : i32
    return %arg0, %c0_i32, %c0_i32_0 : i32, i32, i32
  }
  func.func @transform_2(%arg0: i32) -> (i32, i32, i32) {
    %c0_i32 = arith.constant 0 : i32
    %c0_i32_0 = arith.constant 0 : i32
    %c0_i32_1 = arith.constant 0 : i32
    return %arg0, %c0_i32, %c0_i32_0 : i32, i32, i32
  }
  func.func @transform_3(%arg0: i32) -> (i32, i32, i32) {
    %c0_i32 = arith.constant 0 : i32
    %c0_i32_0 = arith.constant 0 : i32
    %c0_i32_1 = arith.constant 0 : i32
    return %arg0, %c0_i32, %c0_i32_0 : i32, i32, i32
  }
}

</mosaic_0001>

<llo_original>
// kernel: custom-call.4
$region0: #{custom-call.4}
  %s0 = inlined_call_operand.vmem [shape: f32[2,8], index: 0, kind: output, shape index: {}]

// kernel: custom-call.6
$region0: #{custom-call.6}
  %s0 = inlined_call_operand.vmem [shape: f32[3,2,8], index: 0, kind: output, shape index: {}]

// kernel: ot_loss_forward.1
$region0: #{ot_loss_forward.1}
  #allocation0 [shape = 'u32[]', space=smem, size = 0x4, offset = 0x4, fixed_abs, tag = 'smem constant byte address 0x4 - core index']
  #allocation1 [shape = 'u32[144,128]{1,0:T(1,128)}', space=vmem, size = 0x12000, scoped, tag = 'internal scratch']
  #allocation2 [shape = 'bf16[48,768]{1,0:T(16,128)(2,1)}', space=vmem, size = 0x12000, scoped, tag = 'scratch operand']
  %s0 = inlined_call_operand.vmem [shape: bf16[2,8,1024], index: 0, kind: input, shape index: {}]
  %s1 = inlined_call_operand.vmem [shape: s32[2,16,256], index: 1, kind: input, shape index: {}]
  %s2 = inlined_call_operand.vmem [shape: f32[2,3,3], index: 2, kind: input, shape index: {}]
  %s3 = inlined_call_operand.vmem [shape: f32[2,8,3], index: 3, kind: output, shape index: {}]
  %s4 = sld [smem:[#allocation0]]
  $region45: #{ot_loss_forward.1} parent=0
    _
  %s6 = ssub.s32 1, %s4
  %s7 = scalar_select 0, %s6, %s4
  loop: start=0, step=1, limit=4
  $region2: #{ot_loss_forward.1} parent=0 // loop_pre_header
    _
  $region3: #{ot_loss_forward.1} parent=0 // loop_header
    %s9 = sphi 0, %s13
    %p10 = scmp.ge.s32.totalorder %s9, 4
    %s19 = sphi 0, %s21
    %s22 = sphi 0, %s19
    %s23 = sphi 0, %s22
    %s39 = sphi 0, %s23
    %s45 = sphi 0, %s47
    %s48 = sphi 0, %s45
    %s49 = sphi 0, %s48
    %s65 = sphi 0, %s49
    %s71 = sphi 0, %s73
    %s74 = sphi 0, %s71
    %s75 = sphi 0, %s74
    %s91 = sphi 0, %s75
    %s97 = sphi 0, %s99
    %s100 = sphi 0, %s97
    %s101 = sphi 0, %s100
    %s117 = sphi 0, %s101
  $region4: #{ot_loss_forward.1} parent=0 // loop_header_branch
    %12 = sbr.rel (%p10) target = $region8
  $region5: #{ot_loss_forward.1} parent=0 // loop_body
    %s14 = ssub.s32 %s9, 1
    %s15 = ssub.s32 %s9, 2
    %s16 = sadd.s32 %s9, 1
    %s17 = ssub.s32 %s9, %s16
    %p18 = scmp.eq.s32.totalorder %s17, 0
    %s20 = sadd.s32 %s19, 1
    %s21 = scalar_select %p18, %s19, %s20
    %p24 = pneg %p18
    %p25 = scmp.eq.s32.totalorder %s9, 1
    %p26 = por %p24, %p25
    %p27 = scmp.ne.s32.totalorder %s19, %s22
    %p28 = scmp.eq.s32.totalorder %s9, 0
    %p29 = por %p27, %p28
    %p30 = scmp.ne.s32.totalorder %s19, %s22
    %p31 = scmp.eq.s32.totalorder %s14, 1
    %p32 = por %p30, %p31
    %p33 = scmp.ne.s32.totalorder %s22, %s23
    %p34 = scmp.eq.s32.totalorder %s14, 0
    %p35 = por %p33, %p34
    %p36 = scmp.ne.s32.totalorder %s22, %s23
    %p37 = scmp.eq.s32.totalorder %s15, 1
    %p38 = por %p36, %p37
    %p40 = scmp.ne.s32.totalorder %s23, %s39
    %p41 = scmp.eq.s32.totalorder %s15, 0
    %p42 = por %p40, %p41
    %s43 = ssub.s32 %s9, %s16
    %p44 = scmp.eq.s32.totalorder %s43, 0
    %s46 = sadd.s32 %s45, 1
    %s47 = scalar_select %p44, %s45, %s46
    %p50 = pneg %p44
    %p51 = scmp.eq.s32.totalorder %s9, 1
    %p52 = por %p50, %p51
    %p53 = scmp.ne.s32.totalorder %s45, %s48
    %p54 = scmp.eq.s32.totalorder %s9, 0
    %p55 = por %p53, %p54
    %p56 = scmp.ne.s32.totalorder %s45, %s48
    %p57 = scmp.eq.s32.totalorder %s14, 1
    %p58 = por %p56, %p57
    %p59 = scmp.ne.s32.totalorder %s48, %s49
    %p60 = scmp.eq.s32.totalorder %s14, 0
    %p61 = por %p59, %p60
    %p62 = scmp.ne.s32.totalorder %s48, %s49
    %p63 = scmp.eq.s32.totalorder %s15, 1
    %p64 = por %p62, %p63
    %p66 = scmp.ne.s32.totalorder %s49, %s65
    %p67 = scmp.eq.s32.totalorder %s15, 0
    %p68 = por %p66, %p67
    %s69 = ssub.s32 %s9, %s16
    %p70 = scmp.eq.s32.totalorder %s69, 0
    %s72 = sadd.s32 %s71, 1
    %s73 = scalar_select %p70, %s71, %s72
    %p76 = pneg %p70
    %p77 = scmp.eq.s32.totalorder %s9, 1
    %p78 = por %p76, %p77
    %p79 = scmp.ne.s32.totalorder %s71, %s74
    %p80 = scmp.eq.s32.totalorder %s9, 0
    %p81 = por %p79, %p80
    %p82 = scmp.ne.s32.totalorder %s71, %s74
    %p83 = scmp.eq.s32.totalorder %s14, 1
    %p84 = por %p82, %p83
    %p85 = scmp.ne.s32.totalorder %s74, %s75
    %p86 = scmp.eq.s32.totalorder %s14, 0
    %p87 = por %p85, %p86
    %p88 = scmp.ne.s32.totalorder %s74, %s75
    %p89 = scmp.eq.s32.totalorder %s15, 1
    %p90 = por %p88, %p89
    %p92 = scmp.ne.s32.totalorder %s75, %s91
    %p93 = scmp.eq.s32.totalorder %s15, 0
    %p94 = por %p92, %p93
    %s95 = ssub.s32 %s9, %s16
    %p96 = scmp.eq.s32.totalorder %s95, 0
    %s98 = sadd.s32 %s97, 1
    %s99 = scalar_select %p96, %s97, %s98
    %p102 = pneg %p96
    %p103 = scmp.eq.s32.totalorder %s9, 1
    %p104 = por %p102, %p103
    %p105 = scmp.ne.s32.totalorder %s97, %s100
    %p106 = scmp.eq.s32.totalorder %s9, 0
    %p107 = por %p105, %p106
    %p108 = scmp.ne.s32.totalorder %s97, %s100
    %p109 = scmp.eq.s32.totalorder %s14, 1
    %p110 = por %p108, %p109
    %p111 = scmp.ne.s32.totalorder %s100, %s101
    %p112 = scmp.eq.s32.totalorder %s14, 0
    %p113 = por %p111, %p112
    %p114 = scmp.ne.s32.totalorder %s100, %s101
    %p115 = scmp.eq.s32.totalorder %s15, 1
    %p116 = por %p114, %p115
    %p118 = scmp.ne.s32.totalorder %s101, %s117
    %p119 = scmp.eq.s32.totalorder %s15, 0
    %p120 = por %p118, %p119
    %p121 = scmp.le.s32.totalorder 1, %s9
    %p122 = scmp.lt.s32.totalorder %s9, 3
    %p123 = pnand %p121, %p122
    %p124 = pneg %p123
    // Predicated region
    $region9: #{ot_loss_forward.1} parent=5 // pred_check
      _
    $region10: #{ot_loss_forward.1} parent=5 // pred_check_branch
      %126 = sbr.rel (%p123) target = $region12
    $region11: #{ot_loss_forward.1} parent=5 // pred_region
      %s127 = ssub.s32 %s9, 1
    $region12: #{ot_loss_forward.1} parent=5 // pred_fallthru
      _
    %p128 = scmp.lt.s32.totalorder %s9, 2
    // Predicated region
    $region13: #{ot_loss_forward.1} parent=5 // pred_check
      %p129 = pneg %p128
    $region14: #{ot_loss_forward.1} parent=5 // pred_check_branch
      %131 = sbr.rel (%p129) target = $region16
    $region15: #{ot_loss_forward.1} parent=5 // pred_region
      // Predicated region
      $region17: #{ot_loss_forward.1} parent=15 // pred_check
        %p132 = pneg %p29
      $region18: #{ot_loss_forward.1} parent=15 // pred_check_branch
        %134 = sbr.rel (%p132) target = $region20
      $region19: #{ot_loss_forward.1} parent=15 // pred_region
        %p135 = scmp.lt.s32.totalorder %s9, 1
        %s136 = scalar_select %p135, %s9, 1
        %s137 = smul.addr %s136, 8
        %s138 = smul.addr %s137, 4
        %s139 = scalar_lea.vmem %s0, %s138
      $region20: #{ot_loss_forward.1} parent=15 // pred_fallthru
        _
      // Predicated region
      $region21: #{ot_loss_forward.1} parent=15 // pred_check
        %p140 = pneg %p55
      $region22: #{ot_loss_forward.1} parent=15 // pred_check_branch
        %142 = sbr.rel (%p140) target = $region24
      $region23: #{ot_loss_forward.1} parent=15 // pred_region
        %p143 = scmp.lt.s32.totalorder %s9, 1
        %s144 = scalar_select %p143, %s9, 1
        %s145 = smul.addr %s144, 4
        %s146 = smul.addr %s145, 8
        %s147 = scalar_lea.vmem %s1, %s146
      $region24: #{ot_loss_forward.1} parent=15 // pred_fallthru
        _
      // Predicated region
      $region25: #{ot_loss_forward.1} parent=15 // pred_check
        %p148 = pneg %p81
      $region26: #{ot_loss_forward.1} parent=15 // pred_check_branch
        %150 = sbr.rel (%p148) target = $region28
      $region27: #{ot_loss_forward.1} parent=15 // pred_region
        %p151 = scmp.lt.s32.totalorder %s9, 1
        %s152 = scalar_select %p151, %s9, 1
        %s153 = smul.addr %s152, 4
        %s154 = scalar_lea.vmem %s2, %s153
      $region28: #{ot_loss_forward.1} parent=15 // pred_fallthru
        _
    $region16: #{ot_loss_forward.1} parent=5 // pred_fallthru
      _
    %p155 = scmp.le.s32.totalorder 1, %s9
    %p156 = scmp.lt.s32.totalorder %s9, 3
    %p157 = pnand %p155, %p156
    %p158 = pneg %p157
    // Predicated region
    $region29: #{ot_loss_forward.1} parent=5 // pred_check
      _
    $region30: #{ot_loss_forward.1} parent=5 // pred_check_branch
      %160 = sbr.rel (%p157) target = $region32
    $region31: #{ot_loss_forward.1} parent=5 // pred_region
      %s161 = ssub.s32 %s9, 1
      %p162 = scmp.lt.s32.totalorder %s14, 1
      %s163 = scalar_select %p162, %s14, 1
      %s164 = smul.addr %s163, 8
      %s165 = smul.addr %s164, 4
      %s166 = scalar_lea.vmem %s0, %s165
      %p167 = pneg %p35
      %p168 = pneg %p32
      %p169 = scmp.lt.s32.totalorder %s14, 1
      %s170 = scalar_select %p169, %s14, 1
      %s171 = smul.addr %s170, 4
      %s172 = smul.addr %s171, 8
      %s173 = scalar_lea.vmem %s1, %s172
      %p174 = pneg %p61
      %p175 = pneg %p58
      %p176 = scmp.lt.s32.totalorder %s14, 1
      %s177 = scalar_select %p176, %s14, 1
      %s178 = smul.addr %s177, 4
      %s179 = scalar_lea.vmem %s2, %s178
      %p180 = pneg %p87
      %p181 = pneg %p84
      %p182 = pneg %p113
      %p183 = pneg %p110
      %p184 = scmp.lt.s32.totalorder %s14, 1
      %s185 = scalar_select %p184, %s14, 1
      %s186 = smul.addr %s185, 8
      %s187 = scalar_lea.vmem %s3, %s186
      %p188 = scmp.lt.s32.totalorder %s14, 1
      %s189 = scalar_select %p188, %s14, 1
      %s190 = smul.addr %s189, 8
      %s191 = smul.addr %s190, 4
      %s192 = scalar_lea.vmem %s0, %s191
      %p193 = scmp.lt.s32.totalorder %s14, 1
      %s194 = scalar_select %p193, %s14, 1
      %s195 = smul.addr %s194, 4
      %s196 = smul.addr %s195, 8
      %s197 = scalar_lea.vmem %s1, %s196
      %p198 = scmp.lt.s32.totalorder %s14, 1
      %s199 = scalar_select %p198, %s14, 1
      %s200 = smul.addr %s199, 4
      %s201 = scalar_lea.vmem %s2, %s200
      %p202 = scmp.lt.s32.totalorder %s14, 1
      %s203 = scalar_select %p202, %s14, 1
      %s204 = smul.addr %s203, 8
      %s205 = scalar_lea.vmem %s3, %s204
      %207 = vst [vmem:[#allocation2] sm:$0xff] 0
      %208 = vst [vmem:[#allocation2 + $0x8] sm:$0xff] 0
      %209 = vst [vmem:[#allocation2 + $0x10] sm:$0xff] 0
      %210 = vst [vmem:[#allocation2 + $0x18] sm:$0xff] 0
      %211 = vst [vmem:[#allocation2 + $0x20] sm:$0xff] 0
      %212 = vst [vmem:[#allocation2 + $0x28] sm:$0xff] 0
      %213 = vst [vmem:[#allocation2 + $0x30] sm:$0xff] 0
      %214 = vst [vmem:[#allocation2 + $0x38] sm:$0xff] 0
      %215 = vst [vmem:[#allocation2 + $0x40] sm:$0xff] 0
      %216 = vst [vmem:[#allocation2 + $0x48] sm:$0xff] 0
      %217 = vst [vmem:[#allocation2 + $0x50] sm:$0xff] 0
      %218 = vst [vmem:[#allocation2 + $0x58] sm:$0xff] 0
      %219 = vst [vmem:[#allocation2 + $0x60] sm:$0xff] 0
      %220 = vst [vmem:[#allocation2 + $0x68] sm:$0xff] 0
      %221 = vst [vmem:[#allocation2 + $0x70] sm:$0xff] 0
      %222 = vst [vmem:[#allocation2 + $0x78] sm:$0xff] 0
      %223 = vst [vmem:[#allocation2 + $0x80] sm:$0xff] 0
      %224 = vst [vmem:[#allocation2 + $0x88] sm:$0xff] 0
      %v225 = vld [vmem:[%s197] sm:$0xff]
      %v226 = vld [vmem:[%s197 + $0x8] sm:$0xff]
      %v227 = vld [vmem:[%s197 + $0x10] sm:$0xff]
      %v228 = vld [vmem:[%s197 + $0x18] sm:$0xff]
      %vm229 = vcmp.eq.s32.totalorder %v225, 1
      %vm230 = vcmp.eq.s32.totalorder %v226, 1
      %vm231 = vcmp.eq.s32.totalorder %v227, 1
      %vm232 = vcmp.eq.s32.totalorder %v228, 1
      %vm233 = vcmp.eq.s32.totalorder %v225, 4
      %vm234 = vcmp.eq.s32.totalorder %v226, 4
      %vm235 = vcmp.eq.s32.totalorder %v227, 4
      %vm236 = vcmp.eq.s32.totalorder %v228, 4
      %vm237 = vmor %vm229, %vm233
      %vm238 = vmor %vm230, %vm234
      %vm239 = vmor %vm231, %vm235
      %vm240 = vmor %vm232, %vm236
      %v241 = vsel %vm237, 1, 0
      %v242 = vsel %vm238, 1, 0
      %v243 = vsel %vm239, 1, 0
      %v244 = vsel %vm240, 1, 0
      %v245 = vcvt.s32.f32 %v241
      %v246 = vcvt.s32.f32 %v242
      %v247 = vcvt.s32.f32 %v243
      %v248 = vcvt.s32.f32 %v244
      %v249 = vpack.c.bf16 %v247, %v245
      %v250 = vpack.c.bf16 %v248, %v246
      %251 = vst [vmem:[#allocation2] sm:$0xff] %v249
      %252 = vst [vmem:[#allocation2 + $0x8] sm:$0xff] %v250
      %vm253 = vcmp.eq.s32.totalorder %v225, 2
      %vm254 = vcmp.eq.s32.totalorder %v226, 2
      %vm255 = vcmp.eq.s32.totalorder %v227, 2
      %vm256 = vcmp.eq.s32.totalorder %v228, 2
      %vm257 = vmor %vm253, %vm233
      %vm258 = vmor %vm254, %vm234
      %vm259 = vmor %vm255, %vm235
      %vm260 = vmor %vm256, %vm236
      %v261 = vsel %vm257, 1, 0
      %v262 = vsel %vm258, 1, 0
      %v263 = vsel %vm259, 1, 0
      %v264 = vsel %vm260, 1, 0
      %v265 = vcvt.s32.f32 %v261
      %v266 = vcvt.s32.f32 %v262
      %v267 = vcvt.s32.f32 %v263
      %v268 = vcvt.s32.f32 %v264
      %v269 = vpack.c.bf16 %v267, %v265
      %v270 = vpack.c.bf16 %v268, %v266
      %271 = vst [vmem:[#allocation2 + $0x40] sm:$0xff] %v269
      %272 = vst [vmem:[#allocation2 + $0x48] sm:$0xff] %v270
      %vm273 = vcmp.eq.s32.totalorder %v225, 3
      %vm274 = vcmp.eq.s32.totalorder %v226, 3
      %vm275 = vcmp.eq.s32.totalorder %v227, 3
      %vm276 = vcmp.eq.s32.totalorder %v228, 3
      %vm277 = vmor %vm273, %vm233
      %vm278 = vmor %vm274, %vm234
      %vm279 = vmor %vm275, %vm235
      %vm280 = vmor %vm276, %vm236
      %v281 = vsel %vm277, 1, 0
      %v282 = vsel %vm278, 1, 0
      %v283 = vsel %vm279, 1, 0
      %v284 = vsel %vm280, 1, 0
      %v285 = vcvt.s32.f32 %v281
      %v286 = vcvt.s32.f32 %v282
      %v287 = vcvt.s32.f32 %v283
      %v288 = vcvt.s32.f32 %v284
      %v289 = vpack.c.bf16 %v287, %v285
      %v290 = vpack.c.bf16 %v288, %v286
      %291 = vst [vmem:[#allocation2 + $0x80] sm:$0xff] %v289
      %292 = vst [vmem:[#allocation2 + $0x88] sm:$0xff] %v290
      %v293 = vld [vmem:[%s192 + $0x8] sm:$0xff]
      %v294 = vld [vmem:[%s192 + $0x10] sm:$0xff]
      %v295 = vld [vmem:[%s192 + $0x18] sm:$0xff]
      %v296 = vld [vmem:[#allocation2] sm:$0xff]
      %v297 = vld [vmem:[#allocation2 + $0x8] sm:$0xff]
      %v298 = vld [vmem:[#allocation2 + $0x10] sm:$0xff]
      %v299 = vld [vmem:[#allocation2 + $0x18] sm:$0xff]
      %v300 = vld [vmem:[#allocation2 + $0x20] sm:$0xff]
      %v301 = vld [vmem:[#allocation2 + $0x28] sm:$0xff]
      %v302 = vld [vmem:[#allocation2 + $0x30] sm:$0xff]
      %v303 = vld [vmem:[#allocation2 + $0x38] sm:$0xff]
      %v304 = vld [vmem:[#allocation2 + $0x40] sm:$0xff]
      %v305 = vld [vmem:[#allocation2 + $0x48] sm:$0xff]
      %v306 = vld [vmem:[#allocation2 + $0x50] sm:$0xff]
      %v307 = vld [vmem:[#allocation2 + $0x58] sm:$0xff]
      %v308 = vld [vmem:[#allocation2 + $0x60] sm:$0xff]
      %v309 = vld [vmem:[#allocation2 + $0x68] sm:$0xff]
      %v310 = vld [vmem:[#allocation2 + $0x70] sm:$0xff]
      %v311 = vld [vmem:[#allocation2 + $0x78] sm:$0xff]
      %v312 = vld [vmem:[#allocation2 + $0x80] sm:$0xff]
      %v313 = vld [vmem:[#allocation2 + $0x88] sm:$0xff]
      %v317 = vunpack.c.l.b16 %v293
      %v318 = vunpack.c.h.b16 %v293
      %v319 = vunpack.c.l.b16 %v294
      %v320 = vunpack.c.h.b16 %v294
      %v321 = vunpack.c.l.b16 %v295
      %v322 = vunpack.c.h.b16 %v295
      %v323 = vpack.c.b16 %v317, %v317
      %v324 = vpack.c.b16 %v318, %v318
      %v325 = vpack.c.b16 %v319, %v319
      %v326 = vpack.c.b16 %v320, %v320
      %v327 = vpack.c.b16 %v321, %v321
      %v328 = vpack.c.b16 %v322, %v322
      %335 = vmatprep.subr.bf16.mxu0 %v297
      %336 = vmatpush1.bf16.xpose.msra.mxu0 %v296
      %337 = vmatprep.subr.bf16.mxu0 %v303
      %338 = vmatpush1.bf16.xpose.msra.mxu0 %v302
      %339 = vmatprep.subr.bf16.mxu0 %v309
      %340 = vmatpush1.bf16.xpose.msra.mxu0 %v308
      %341 = vmatprep.subr.bf16.mxu0 0
      %342 = vmatpush1.bf16.xpose.msra.mxu0 0
      %343 = vmatprep.subr.bf16.mxu0 0
      %344 = vmatpush1.bf16.xpose.msra.mxu0 0
      %345 = vmatprep.subr.bf16.mxu0 0
      %346 = vmatpush1.bf16.xpose.msra.mxu0 0
      %347 = vmatprep.subr.bf16.mxu0 0
      %348 = vmatpush1.bf16.xpose.msra.mxu0 0
      %349 = vmatprep.subr.bf16.mxu0 0
      %350 = vmatpush1.bf16.xpose.msra.mxu0 0
      %351 = vmatprep.subr.bf16.mxu0 0
      %352 = vmatpush1.bf16.xpose.msra.mxu0 0
      %353 = vmatprep.subr.bf16.mxu0 0
      %354 = vmatpush1.bf16.xpose.msra.mxu0 0
      %355 = vmatprep.subr.bf16.mxu0 0
      %356 = vmatpush1.bf16.xpose.msra.mxu0 0
      %357 = vmatprep.subr.bf16.mxu0 0
      %358 = vmatpush1.bf16.xpose.msra.mxu0 0
      %359 = vmatprep.subr.bf16.mxu0 0
      %360 = vmatpush1.bf16.xpose.msra.mxu0 0
      %361 = vmatprep.subr.bf16.mxu0 0
      %362 = vmatpush1.bf16.xpose.msra.mxu0 0
      %363 = vmatprep.subr.bf16.mxu0 0
      %364 = vmatpush1.bf16.xpose.msra.mxu0 0
      %365 = vmatprep.subr.bf16.mxu0 0
      %366 = vmatpush1.bf16.xpose.msra.mxu0 0
      %367 = vmatprep.mubr.bf16.mxu0 %v324
      %368 = vmatmul.mubr.bf16.gmra.mrb[0].mxu0 %v323
      %v369 = vpop.f32.mrb[0].mxu0
      %v370 = vadd.f32 0.0, %v369
      %v371 = vpop.f32.mrb[0].mxu0
      %v372 = vpop.f32.mrb[0].mxu0
      %v373 = vpop.f32.mrb[0].mxu0
      %374 = vdwg.mxu0
      %375 = vmatprep.subr.bf16.mxu0 %v299
      %376 = vmatpush1.bf16.xpose.msra.mxu0 %v298
      %377 = vmatprep.subr.bf16.mxu0 %v305
      %378 = vmatpush1.bf16.xpose.msra.mxu0 %v304
      %379 = vmatprep.subr.bf16.mxu0 %v311
      %380 = vmatpush1.bf16.xpose.msra.mxu0 %v310
      %381 = vmatprep.subr.bf16.mxu0 0
      %382 = vmatpush1.bf16.xpose.msra.mxu0 0
      %383 = vmatprep.subr.bf16.mxu0 0
      %384 = vmatpush1.bf16.xpose.msra.mxu0 0
      %385 = vmatprep.subr.bf16.mxu0 0
      %386 = vmatpush1.bf16.xpose.msra.mxu0 0
      %387 = vmatprep.subr.bf16.mxu0 0
      %388 = vmatpush1.bf16.xpose.msra.mxu0 0
      %389 = vmatprep.subr.bf16.mxu0 0
      %390 = vmatpush1.bf16.xpose.msra.mxu0 0
      %391 = vmatprep.subr.bf16.mxu0 0
      %392 = vmatpush1.bf16.xpose.msra.mxu0 0
      %393 = vmatprep.subr.bf16.mxu0 0
      %394 = vmatpush1.bf16.xpose.msra.mxu0 0
      %395 = vmatprep.subr.bf16.mxu0 0
      %396 = vmatpush1.bf16.xpose.msra.mxu0 0
      %397 = vmatprep.subr.bf16.mxu0 0
      %398 = vmatpush1.bf16.xpose.msra.mxu0 0
      %399 = vmatprep.subr.bf16.mxu0 0
      %400 = vmatpush1.bf16.xpose.msra.mxu0 0
      %401 = vmatprep.subr.bf16.mxu0 0
      %402 = vmatpush1.bf16.xpose.msra.mxu0 0
      %403 = vmatprep.subr.bf16.mxu0 0
      %404 = vmatpush1.bf16.xpose.msra.mxu0 0
      %405 = vmatprep.subr.bf16.mxu0 0
      %406 = vmatpush1.bf16.xpose.msra.mxu0 0
      %407 = vmatprep.mubr.bf16.mxu0 %v326
      %408 = vmatmul.mubr.bf16.gmra.mrb[0].mxu0 %v325
      %v409 = vpop.f32.mrb[0].mxu0
      %v410 = vadd.f32 %v370, %v409
      %v411 = vpop.f32.mrb[0].mxu0
      %v412 = vpop.f32.mrb[0].mxu0
      %v413 = vpop.f32.mrb[0].mxu0
      %414 = vdwg.mxu0
      %415 = vmatprep.subr.bf16.mxu0 %v301
      %416 = vmatpush1.bf16.xpose.msra.mxu0 %v300
      %417 = vmatprep.subr.bf16.mxu0 %v307
      %418 = vmatpush1.bf16.xpose.msra.mxu0 %v306
      %419 = vmatprep.subr.bf16.mxu0 %v313
      %420 = vmatpush1.bf16.xpose.msra.mxu0 %v312
      %421 = vmatprep.subr.bf16.mxu0 0
      %422 = vmatpush1.bf16.xpose.msra.mxu0 0
      %423 = vmatprep.subr.bf16.mxu0 0
      %424 = vmatpush1.bf16.xpose.msra.mxu0 0
      %425 = vmatprep.subr.bf16.mxu0 0
      %426 = vmatpush1.bf16.xpose.msra.mxu0 0
      %427 = vmatprep.subr.bf16.mxu0 0
      %428 = vmatpush1.bf16.xpose.msra.mxu0 0
      %429 = vmatprep.subr.bf16.mxu0 0
      %430 = vmatpush1.bf16.xpose.msra.mxu0 0
      %431 = vmatprep.subr.bf16.mxu0 0
      %432 = vmatpush1.bf16.xpose.msra.mxu0 0
      %433 = vmatprep.subr.bf16.mxu0 0
      %434 = vmatpush1.bf16.xpose.msra.mxu0 0
      %435 = vmatprep.subr.bf16.mxu0 0
      %436 = vmatpush1.bf16.xpose.msra.mxu0 0
      %437 = vmatprep.subr.bf16.mxu0 0
      %438 = vmatpush1.bf16.xpose.msra.mxu0 0
      %439 = vmatprep.subr.bf16.mxu0 0
      %440 = vmatpush1.bf16.xpose.msra.mxu0 0
      %441 = vmatprep.subr.bf16.mxu0 0
      %442 = vmatpush1.bf16.xpose.msra.mxu0 0
      %443 = vmatprep.subr.bf16.mxu0 0
      %444 = vmatpush1.bf16.xpose.msra.mxu0 0
      %445 = vmatprep.subr.bf16.mxu0 0
      %446 = vmatpush1.bf16.xpose.msra.mxu0 0
      %447 = vmatprep.mubr.bf16.mxu0 %v328
      %448 = vmatmul.mubr.bf16.gmra.mrb[0].mxu0 %v327
      %v449 = vpop.f32.mrb[0].mxu0
      %v450 = vadd.f32 %v410, %v449
      %v451 = vpop.f32.mrb[0].mxu0
      %v452 = vpop.f32.mrb[0].mxu0
      %v453 = vpop.f32.mrb[0].mxu0
      %454 = vdwg.mxu0
      %v455 = vld [vmem:[%s201] sm:$0x7]
      %457 = vset.pattern.permute.xlu0 3
      %458 = vperm.xlu0 %457, %v450
      %v459 = vpop.permute.xlu0 %458
      %v461 = vlaneseq
      %v462 = vshrl.u32 %v461, 7
      %v463 = vsub.s32 0, %v462
      %v464 = vrot.slane %v455, %v463
      %v465 = vadd.f32 %v459, %v464
      %v466 = vsub.f32 %v465, %v450
      %v467 = vadd.f32 %v450, 1.0
      %v468 = vadd.f32 %v466, 1.0
      %v469 = vrcp.pop %v468
      %v470 = vmul.f32 %v467, %v469
      %v471 = vadd.f32 %v470, 0.0
      %472 = vset.pattern.permute.xlu0 19
      %473 = vperm.xlu0 %472, %v450
      %v474 = vpop.permute.xlu0 %473
      %v476 = vlaneseq
      %v477 = vshrl.u32 %v476, 7
      %v478 = vsub.s32 1, %v477
      %v479 = vrot.slane %v455, %v478
      %v480 = vadd.f32 %v474, %v479
      %481 = vrot.lane.b32.xlu0 %v450, 112
      %v482 = vpop.permute.xlu0 %481
      %v484 = vsub.f32 %v480, %v482
      %v485 = vadd.f32 %v484, 1.0
      %487 = vrot.lane.b32.xlu0 %v485, 16
      %v488 = vpop.permute.xlu0 %487
      %v490 = vrcp.pop %v488
      %v491 = vmul.f32 %v467, %v490
      %493 = vrot.lane.b32.xlu0 %v491, 112
      %v494 = vpop.permute.xlu0 %493
      %v496 = vadd.f32 %v471, %v494
      %497 = vset.pattern.permute.xlu0 35
      %498 = vperm.xlu0 %497, %v450
      %v499 = vpop.permute.xlu0 %498
      %v501 = vlaneseq
      %v502 = vshrl.u32 %v501, 7
      %v503 = vsub.s32 2, %v502
      %v504 = vrot.slane %v455, %v503
      %v505 = vadd.f32 %v499, %v504
      %506 = vrot.lane.b32.xlu0 %v450, 96
      %v507 = vpop.permute.xlu0 %506
      %v509 = vsub.f32 %v505, %v507
      %v510 = vadd.f32 %v509, 1.0
      %512 = vrot.lane.b32.xlu0 %v510, 32
      %v513 = vpop.permute.xlu0 %512
      %v515 = vrcp.pop %v513
      %v516 = vmul.f32 %v467, %v515
      %518 = vrot.lane.b32.xlu0 %v516, 96
      %v519 = vpop.permute.xlu0 %518
      %v521 = vadd.f32 %v496, %v519
      %v522 = vmul.f32 %v521, 0.33333334
      %v523 = vsub.f32 1.0, %v522
      %vm524 = vcmask 23552
      %525 = vst.msk [vmem:[%s205] sm:$0xff] %vm524, %v523
      %p526 = scmp.lt.s32.totalorder %s14, 1
      %s527 = scalar_select %p526, %s14, 1
      %s528 = smul.addr %s527, 8
      %s529 = scalar_lea.vmem %s3, %s528
      // Predicated region
      $region33: #{ot_loss_forward.1} parent=31 // pred_check
        %p530 = pneg %p110
      $region34: #{ot_loss_forward.1} parent=31 // pred_check_branch
        %532 = sbr.rel (%p530) target = $region36
      $region35: #{ot_loss_forward.1} parent=31 // pred_region
        _
      $region36: #{ot_loss_forward.1} parent=31 // pred_fallthru
        _
    $region32: #{ot_loss_forward.1} parent=5 // pred_fallthru
      _
    %p533 = scmp.le.s32.totalorder 2, %s9
    // Predicated region
    $region37: #{ot_loss_forward.1} parent=5 // pred_check
      %p534 = pneg %p533
    $region38: #{ot_loss_forward.1} parent=5 // pred_check_branch
      %536 = sbr.rel (%p534) target = $region40
    $region39: #{ot_loss_forward.1} parent=5 // pred_region
      %s537 = ssub.s32 %s9, 2
      // Predicated region
      $region41: #{ot_loss_forward.1} parent=39 // pred_check
        %p538 = pneg %p116
      $region42: #{ot_loss_forward.1} parent=39 // pred_check_branch
        %540 = sbr.rel (%p538) target = $region44
      $region43: #{ot_loss_forward.1} parent=39 // pred_region
        %p541 = scmp.lt.s32.totalorder %s15, 1
        %s542 = scalar_select %p541, %s15, 1
        %s543 = smul.addr %s542, 8
        %s544 = scalar_lea.vmem %s3, %s543
      $region44: #{ot_loss_forward.1} parent=39 // pred_fallthru
        _
    $region40: #{ot_loss_forward.1} parent=5 // pred_fallthru
      _
  $region6: #{ot_loss_forward.1} parent=0 // loop_footer
    %s13 = sadd.s32 1, %s9
  $region7: #{ot_loss_forward.1} parent=0 // loop_footer_branch
    %8 = sbr.rel target = $region3
  $region8: #{ot_loss_forward.1} parent=0 // loop_exit
    _

</llo_original>
